<compile_context>
chip_gen: v7x
topology: tpu7x:2x2x1
jax: 0.10.0
libtpu: 0.0.40
codegen_flags: <defaults>
</compile_context>

<pallas_src>
import jax
import jax.numpy as jnp
from jax.experimental import pallas as pl
from jax.experimental.pallas import tpu as pltpu


def _copy_kernel(x_ref, o_ref):
    # Identity copy of the current (B, TF) lane-dense tile.
    o_ref[...] = x_ref[...]


# Per-block byte cap: double-buffered input + output tiles must fit the
# smallest scoped-VMEM defaults across generations (v5e: 16 MiB scoped,
# v7x: 32 MiB scoped / 64 MiB physical).
_MAX_BLOCK_BYTES = 4 * 1024 * 1024
# Below this flat width, one block is cheaper than paying ~0.35 us/grid-step.
_SINGLE_BLOCK_FLAT = 2048
# Candidate lane-dense tile widths (multiples of 128), largest first.
_TILE_CANDIDATES = (2048, 1024, 512, 256, 128)


def _pick_tile(b, flat, itemsize):
    """Pick a flat-axis tile width, or None for the single-block path."""
    if flat <= _SINGLE_BLOCK_FLAT:
        return None
    for tf in _TILE_CANDIDATES:
        if flat % tf == 0 and b * tf * itemsize <= _MAX_BLOCK_BYTES:
            return tf
    # flat is not a multiple of 128 (or batch is huge): fall back to one
    # full-extent block so the output stays unmasked / lane-dense.
    return None


def reshape_forward(x):
    """Pallas equivalent of PyTorch ``x.view(x.size(0), -1)`` for NCHW input."""
    b = x.shape[0]
    flat = 1
    for d in x.shape[1:]:
        flat *= d

    # Metadata-only flatten; the on-device work is the aliased copy below.
    x2d = jnp.reshape(x, (b, flat))
    itemsize = jnp.dtype(x.dtype).itemsize

    tf = _pick_tile(b, flat, itemsize)
    if tf is None:
        grid = (1,)
        block = (b, flat)
        index_map = lambda i: (0, 0)
    else:
        grid = (flat // tf,)
        block = (b, tf)
        index_map = lambda i: (0, i)

    out = pl.pallas_call(
        _copy_kernel,
        out_shape=jax.ShapeDtypeStruct((b, flat), x.dtype),
        grid=grid,
        in_specs=[pl.BlockSpec(block, index_map)],
        out_specs=pl.BlockSpec(block, index_map),
        # Reshape is metadata-only: alias input -> output so XLA can donate
        # the buffer and elide the redundant write.
        input_output_aliases={0: 0},
        cost_estimate=pl.CostEstimate(
            flops=0,
            transcendentals=0,
            bytes_accessed=2 * b * flat * itemsize,
        ),
        compiler_params=pltpu.CompilerParams(
            # "parallel" lets v7x shard the bandwidth-bound copy across its
            # two TensorCores; ~neutral on single-TC v5e/v6e.
            dimension_semantics=("parallel",),
        ),
    )(x2d)
    return out


if __name__ == "__main__":
    key = jax.random.PRNGKey(0)

    # Small NCHW input consistent with the module (single-block path).
    x_small = jax.random.normal(key, (2, 4, 16, 16), dtype=jnp.float32)
    y_small = jax.block_until_ready(reshape_forward(x_small))
    ref_small = jnp.reshape(x_small, (x_small.shape[0], -1))
    assert y_small.shape == (2, 4 * 16 * 16), y_small.shape
    assert y_small.dtype == x_small.dtype
    assert bool(jnp.all(y_small == ref_small))

    # Larger NCHW input to exercise the tiled, pipelined path
    # (flat = 8*32*32 = 8192 -> 4 grid steps of width 2048).
    x_big = jax.random.normal(key, (4, 8, 32, 32), dtype=jnp.float32)
    y_big = jax.block_until_ready(reshape_forward(x_big))
    ref_big = jnp.reshape(x_big, (x_big.shape[0], -1))
    assert y_big.shape == (4, 8 * 32 * 32), y_big.shape
    assert y_big.dtype == x_big.dtype
    assert bool(jnp.all(y_big == ref_big))

    print("KERNEL_OK")
</pallas_src>

<mosaic_0001>
module attributes {stable_mosaic.version = 11 : i64} {
  func.func @_copy_kernel(%arg0: i32, %arg1: memref<2x1024xf32, #tpu.memory_space<vmem>>, %arg2: memref<2x1024xf32, #tpu.memory_space<vmem>>) attributes {dimension_semantics = [#tpu.dimension_semantics<parallel>], iteration_bounds = array<i64: 1>, scalar_prefetch = 0 : i64, scratch_operands = 0 : i64, tpu.core_type = #tpu.core_type<tc>, window_params = [{pipeline_mode = #tpu.pipeline_mode<synchronous>, transform_indices = @transform_0, window_bounds = array<i64: 2, 1024>}, {pipeline_mode = #tpu.pipeline_mode<synchronous>, transform_indices = @transform_1, window_bounds = array<i64: 2, 1024>}]} {
    %c0 = arith.constant 0 : index
    %c0_0 = arith.constant 0 : index
    %0 = vector.load %arg1[%c0, %c0_0] : memref<2x1024xf32, #tpu.memory_space<vmem>>, vector<2x1024xf32>
    %c0_1 = arith.constant 0 : index
    %c0_2 = arith.constant 0 : index
    %1 = vector.load %arg2[%c0_1, %c0_2] : memref<2x1024xf32, #tpu.memory_space<vmem>>, vector<2x1024xf32>
    tpu.vector_store %arg2[%c0_1, %c0_2], %0 {strides = array<i32>} : memref<2x1024xf32, #tpu.memory_space<vmem>>, vector<2x1024xf32>,
    return
  }
  func.func @transform_0(%arg0: i32) -> (i32, i32) {
    %c0_i32 = arith.constant 0 : i32
    %c0_i32_0 = arith.constant 0 : i32
    %c0_i32_1 = arith.constant 0 : i32
    return %c0_i32, %c0_i32_0 : i32, i32
  }
  func.func @transform_1(%arg0: i32) -> (i32, i32) {
    %c0_i32 = arith.constant 0 : i32
    %c0_i32_0 = arith.constant 0 : i32
    %c0_i32_1 = arith.constant 0 : i32
    return %c0_i32, %c0_i32_0 : i32, i32
  }
}

</mosaic_0001>

<llo_original>
// kernel: tpu_custom_call.1
$region0: #{tpu_custom_call.1}
  #allocation0 [shape = 'u32[]', space=smem, size = 0x4, offset = 0x4, fixed_abs, tag = 'smem constant byte address 0x4 - core index']
  #allocation1 [shape = 'u32[144,128]{1,0:T(1,128)}', space=vmem, size = 0x12000, scoped, tag = 'internal scratch']
  %s0 = inlined_call_operand.hbm [shape: f32[2,1024], index: 0, kind: input, shape index: {}, may-alias: {0,1}]
  %s1 = inlined_call_operand.hbm [shape: f32[2,1024], index: 1, kind: output, shape index: {}, may-alias: {0,1}]
  %s2 = sld [smem:[#allocation0]]
  $region18: #{tpu_custom_call.1} parent=0
    _
  %s4 = ssub.s32 1, %s2
  %s5 = scalar_select 0, %s4, %s2
  $region1: #{tpu_custom_call.1} parent=0
    #allocation2 [shape = 'u8[8192]{0}', space=vmem, size = 0x2000, scoped, tag = 'input window, operand 0, single buffered']
    #allocation3 [shape = 's32[1]{0}', space=sflag, size = 0x4, scoped, tag = 'scoped memory for tpu_custom_call.1']
    #allocation4 [shape = 's32[1]{0}', space=sflag, size = 0x4, scoped, tag = 'scoped memory for tpu_custom_call.1']
    #allocation5 [shape = 'u8[8192]{0}', space=vmem, size = 0x2000, scoped, tag = 'output window, operand 0, single buffered']
    %6 = vsyncpa [#allocation3], 0
    %7 = vsyncpa [#allocation4], 0
    // Predicated region
    $region2: #{tpu_custom_call.1} parent=1 // pred_check
      _
    $region3: #{tpu_custom_call.1} parent=1 // pred_check_branch
      %9 = sbr.rel (0) target = $region5
    $region4: #{tpu_custom_call.1} parent=1 // pred_region
      %s11 = ssub.s32 256, 256
      %12 = vsyncadd [#allocation3], %s11
      %s14 = sshll.u32 [#allocation2], 4
      %s15 = int_to_ptr.vmem [resolvable:$true] %s14
      %17 = dma.hbm_to_vmem [thread:$0]  %s0, 256, %s15, [#allocation3]
    $region5: #{tpu_custom_call.1} parent=1 // pred_fallthru
      _
    // Predicated region
    $region6: #{tpu_custom_call.1} parent=1 // pred_check
      _
    $region7: #{tpu_custom_call.1} parent=1 // pred_check_branch
      %19 = sbr.rel (0) target = $region9
    $region8: #{tpu_custom_call.1} parent=1 // pred_region
      %20 = dma.done [#allocation3], 256
    $region9: #{tpu_custom_call.1} parent=1 // pred_fallthru
      _
    %v21 = vld [vmem:[#allocation2] sm:$0xff]
    %v22 = vld [vmem:[#allocation2 + $0x8] sm:$0xff]
    %23 = vst [vmem:[#allocation5] sm:$0xff] %v21
    %24 = vst [vmem:[#allocation5 + $0x8] sm:$0xff] %v22
    // Predicated region
    $region10: #{tpu_custom_call.1} parent=1 // pred_check
      _
    $region11: #{tpu_custom_call.1} parent=1 // pred_check_branch
      %26 = sbr.rel (0) target = $region13
    $region12: #{tpu_custom_call.1} parent=1 // pred_region
      %s28 = ssub.s32 256, 256
      %29 = vsyncadd [#allocation4], %s28
      %s31 = sshll.u32 [#allocation5], 4
      %s32 = int_to_ptr.vmem [resolvable:$true] %s31
      %34 = dma.vmem_to_hbm [thread:$0]  %s32, 256, %s1, [#allocation4]
    $region13: #{tpu_custom_call.1} parent=1 // pred_fallthru
      _
    // Predicated region
    $region14: #{tpu_custom_call.1} parent=1 // pred_check
      _
    $region15: #{tpu_custom_call.1} parent=1 // pred_check_branch
      %36 = sbr.rel (0) target = $region17
    $region16: #{tpu_custom_call.1} parent=1 // pred_region
      %37 = dma.done [#allocation4], 256
    $region17: #{tpu_custom_call.1} parent=1 // pred_fallthru
      _
    %38 = vsyncpa [#allocation3], 1
    %39 = vsyncpa [#allocation4], 1

</llo_original>
